<compile_context>
chip_gen: v7x
topology: tpu7x:2x2x1
jax: 0.10.0
libtpu: 0.0.40
codegen_flags: <defaults>
</compile_context>

<pallas_src>
import jax
import jax.numpy as jnp
from jax.experimental import pallas as pl
from jax.experimental.pallas import tpu as pltpu


def _conv_stats_kernel(p_ref, w_ref, b_ref, conv_ref, sum_ref, sumsq_ref):
    # p_ref:      (K, TM)      bf16  im2col patch tile (K = 9*Cin, channel-major)
    # w_ref:      (Cout, K)    bf16  flattened conv weight
    # b_ref:      (Cout, 1)    f32   conv bias
    # conv_ref:   (Cout, TM)   f32   pre-BN conv output tile (lane-dense, TM % 128 == 0)
    # sum_ref:    (1, Cout, 1) f32   per-tile partial sum  (BN statistics)
    # sumsq_ref:  (1, Cout, 1) f32   per-tile partial sum of squares
    acc = jnp.dot(w_ref[...], p_ref[...], preferred_element_type=jnp.float32)
    acc = acc + b_ref[...]
    conv_ref[...] = acc
    sum_ref[...] = jnp.sum(acc, axis=1, keepdims=True)[None]
    sumsq_ref[...] = jnp.sum(acc * acc, axis=1, keepdims=True)[None]


def _bn_apply_kernel(conv_ref, scale_ref, shift_ref, o_ref):
    # conv_ref: (Cout, TM) f32, scale/shift: (Cout, 1) f32, o_ref: (1, Cout, TM)
    y = conv_ref[...] * scale_ref[...] + shift_ref[...]
    o_ref[...] = y[None].astype(o_ref.dtype)


def _pick_tile_rows(H, W, target_lanes=1024):
    """Largest row-tile TH dividing H with TH*W a multiple of 128 and <= target_lanes."""
    for th in range(H, 0, -1):
        if H % th:
            continue
        tm = th * W
        if tm % 128 == 0 and tm <= target_lanes:
            return th
    return H  # fallback: full-height tiles


def atrous_module(x_nchw, weight_oihw, bias, gamma, beta, *, rate, eps=1e-5,
                  compute_dtype=jnp.bfloat16):
    """Functional equivalent of Atrous_module.forward(x) for NCHW input."""
    N, Cin, H, W = x_nchw.shape
    Cout = weight_oihw.shape[0]
    K = 9 * Cin
    M = N * H * W

    TH = _pick_tile_rows(H, W)
    nht = H // TH
    TM = TH * W
    num_tiles = N * nht
    assert TM % 128 == 0 or num_tiles == 1, "tile lane width must be 128-aligned"

    # --- K-major im2col of the 9 dilated taps, built directly from NCHW.  The spatial zero-pad
    #     for padding=rate fuses into this single XLA copy (no separate padded-activation pass).
    xp = jnp.pad(x_nchw, ((0, 0), (0, 0), (rate, rate), (rate, rate)))
    taps = [xp[:, :, kh * rate:kh * rate + H, kw * rate:kw * rate + W]
            for kh in range(3) for kw in range(3)]
    patches = jnp.stack(taps, axis=0)                       # (9, N, Cin, H, W)
    patches = jnp.transpose(patches, (0, 2, 1, 3, 4))       # (9, Cin, N, H, W)
    patches = patches.reshape(K, M).astype(compute_dtype)   # (K, M), bf16 MXU operand

    # (Cout, Cin, 3, 3) -> (Cout, 3, 3, Cin) -> (Cout, 9*Cin), matching the tap/channel order.
    w_flat = jnp.transpose(weight_oihw, (0, 2, 3, 1)).reshape(Cout, K).astype(compute_dtype)
    b_col = bias.astype(jnp.float32).reshape(Cout, 1)

    # Explicit scoped-VMEM budget sized from the tiles (double-buffered) with headroom,
    # capped safely below v7x's 64 MiB physical VMEM.
    itemsize = jnp.dtype(compute_dtype).itemsize
    tile_bytes = K * TM * itemsize + Cout * TM * 4 + 2 * Cout * 4 + K * Cout * itemsize + Cout * 4
    vmem_limit = int(min(max(4 * tile_bytes, 16 << 20), 48 << 20))
    cparams = pltpu.CompilerParams(
        dimension_semantics=("parallel",),
        vmem_limit_bytes=vmem_limit,
    )

    # ---- Pass 1: tiled conv (single matmul per tile) + fused partial BN statistics.
    conv, sums, sumsqs = pl.pallas_call(
        _conv_stats_kernel,
        grid=(num_tiles,),
        in_specs=[
            pl.BlockSpec((K, TM), lambda t: (0, t)),
            pl.BlockSpec((Cout, K), lambda t: (0, 0)),
            pl.BlockSpec((Cout, 1), lambda t: (0, 0)),
        ],
        out_specs=(
            pl.BlockSpec((Cout, TM), lambda t: (0, t)),
            pl.BlockSpec((1, Cout, 1), lambda t: (t, 0, 0)),
            pl.BlockSpec((1, Cout, 1), lambda t: (t, 0, 0)),
        ),
        out_shape=(
            jax.ShapeDtypeStruct((Cout, M), jnp.float32),
            jax.ShapeDtypeStruct((num_tiles, Cout, 1), jnp.float32),
            jax.ShapeDtypeStruct((num_tiles, Cout, 1), jnp.float32),
        ),
        compiler_params=cparams,
    )(patches, w_flat, b_col)

    # ---- Tiny cross-tile reduction of the partial statistics (batch stats, biased variance).
    mean = jnp.sum(sums, axis=0) / M                                   # (Cout, 1)
    ex2 = jnp.sum(sumsqs, axis=0) / M                                  # (Cout, 1)
    var = jnp.maximum(ex2 - mean * mean, 0.0)
    inv = jax.lax.rsqrt(var + eps)
    scale = gamma.astype(jnp.float32).reshape(Cout, 1) * inv
    shift = beta.astype(jnp.float32).reshape(Cout, 1) - mean * scale

    # ---- Pass 2: apply BN and scatter into (N, Cout, H*W); final NCHW is a free reshape.
    out = pl.pallas_call(
        _bn_apply_kernel,
        grid=(num_tiles,),
        in_specs=[
            pl.BlockSpec((Cout, TM), lambda t: (0, t)),
            pl.BlockSpec((Cout, 1), lambda t: (0, 0)),
            pl.BlockSpec((Cout, 1), lambda t: (0, 0)),
        ],
        out_specs=pl.BlockSpec((1, Cout, TM), lambda t: (t // nht, 0, t % nht)),
        out_shape=jax.ShapeDtypeStruct((N, Cout, H * W), x_nchw.dtype),
        compiler_params=cparams,
    )(conv, scale, shift)

    return out.reshape(N, Cout, H, W)


def _reference(x_nchw, weight_oihw, bias, gamma, beta, *, rate, eps=1e-5,
               compute_dtype=jnp.float32):
    """Pure-JAX reference (lax conv + BN with batch stats).  compute_dtype matches the MXU
    operand precision used by the kernel so the comparison isolates kernel structure."""
    conv = jax.lax.conv_general_dilated(
        x_nchw.astype(compute_dtype),
        weight_oihw.astype(compute_dtype),
        window_strides=(1, 1),
        padding=((rate, rate), (rate, rate)),
        rhs_dilation=(rate, rate),
        dimension_numbers=("NCHW", "OIHW", "NCHW"),
        preferred_element_type=jnp.float32,
    ) + bias.astype(jnp.float32)[None, :, None, None]
    mean = jnp.mean(conv, axis=(0, 2, 3), keepdims=True)
    var = jnp.mean((conv - mean) ** 2, axis=(0, 2, 3), keepdims=True)
    y = (conv - mean) * jax.lax.rsqrt(var + eps)
    return y * gamma[None, :, None, None] + beta[None, :, None, None]


if __name__ == "__main__":
    # Small shapes consistent with the module: inplanes=4, planes=8, rate=2, 16x16 spatial.
    N, Cin, Cout, H, W, rate = 2, 4, 8, 16, 16, 2

    key = jax.random.PRNGKey(0)
    kx, kw, kb, kg, kbeta = jax.random.split(key, 5)

    x = jax.random.normal(kx, (N, Cin, H, W), dtype=jnp.float32)
    weight = jax.random.normal(kw, (Cout, Cin, 3, 3), dtype=jnp.float32) * 0.1  # conv weight (OIHW)
    bias = jax.random.normal(kb, (Cout,), dtype=jnp.float32) * 0.1              # conv bias
    gamma = 1.0 + 0.1 * jax.random.normal(kg, (Cout,), dtype=jnp.float32)       # BN weight
    beta = 0.1 * jax.random.normal(kbeta, (Cout,), dtype=jnp.float32)           # BN bias

    out = jax.block_until_ready(atrous_module(x, weight, bias, gamma, beta, rate=rate))
    assert out.shape == (N, Cout, H, W), out.shape

    # Validate against a reference using the same bf16 MXU-operand precision (f32 accumulation);
    # BN renormalizes, so this isolates kernel-structure errors from dtype rounding.
    ref = jax.block_until_ready(
        _reference(x, weight, bias, gamma, beta, rate=rate, compute_dtype=jnp.bfloat16))
    max_err = float(jnp.max(jnp.abs(out - ref)))
    assert jnp.allclose(out, ref, atol=1e-2, rtol=1e-2), max_err

    print("KERNEL_OK")
</pallas_src>

<mosaic_0001>
module attributes {stable_mosaic.version = 11 : i64} {
  func.func @_conv_stats_kernel(%arg0: i32, %arg1: memref<36x256xbf16, #tpu.memory_space<vmem>>, %arg2: memref<8x36xbf16, #tpu.memory_space<vmem>>, %arg3: memref<8x1xf32, #tpu.memory_space<vmem>>, %arg4: memref<8x256xf32, #tpu.memory_space<vmem>>, %arg5: memref<1x8x1xf32, #tpu.memory_space<vmem>>, %arg6: memref<1x8x1xf32, #tpu.memory_space<vmem>>) attributes {dimension_semantics = [#tpu.dimension_semantics<parallel>], iteration_bounds = array<i64: 2>, scalar_prefetch = 0 : i64, scratch_operands = 0 : i64, tpu.core_type = #tpu.core_type<tc>, window_params = [{transform_indices = @transform_0, window_bounds = array<i64: 36, 256>}, {pipeline_mode = #tpu.pipeline_mode<synchronous>, transform_indices = @transform_1, window_bounds = array<i64: 8, 36>}, {pipeline_mode = #tpu.pipeline_mode<synchronous>, transform_indices = @transform_2, window_bounds = array<i64: 8, 1>}, {transform_indices = @transform_3, window_bounds = array<i64: 8, 256>}, {transform_indices = @transform_4, window_bounds = array<i64: 1, 8, 1>}, {transform_indices = @transform_5, window_bounds = array<i64: 1, 8, 1>}]} {
    %c0 = arith.constant 0 : index
    %c0_0 = arith.constant 0 : index
    %0 = vector.load %arg2[%c0, %c0_0] : memref<8x36xbf16, #tpu.memory_space<vmem>>, vector<8x36xbf16>
    %c0_1 = arith.constant 0 : index
    %c0_2 = arith.constant 0 : index
    %1 = vector.load %arg1[%c0_1, %c0_2] : memref<36x256xbf16, #tpu.memory_space<vmem>>, vector<36x256xbf16>
    %cst = arith.constant dense<0.000000e+00> : vector<8x256xf32>
    %2 = tpu.matmul %0, %1, %cst {dimension_numbers = #tpu.dot_dimension_numbers<[1], [0], [0], [1], [0, 0, 1, 1], [], []>} : vector<8x36xbf16>, vector<36x256xbf16>, vector<8x256xf32> -> vector<8x256xf32>
    %c0_3 = arith.constant 0 : index
    %c0_4 = arith.constant 0 : index
    %3 = vector.load %arg3[%c0_3, %c0_4] : memref<8x1xf32, #tpu.memory_space<vmem>>, vector<8x1xf32>
    %4 = vector.broadcast %3 : vector<8x1xf32> to vector<8x256xf32>
    %5 = arith.addf %2, %4 : vector<8x256xf32>
    %c0_5 = arith.constant 0 : index
    %c0_6 = arith.constant 0 : index
    %6 = vector.load %arg4[%c0_5, %c0_6] : memref<8x256xf32, #tpu.memory_space<vmem>>, vector<8x256xf32>
    tpu.vector_store %arg4[%c0_5, %c0_6], %5 {strides = array<i32>} : memref<8x256xf32, #tpu.memory_space<vmem>>, vector<8x256xf32>,
    %cst_7 = arith.constant dense<0.000000e+00> : vector<8xf32>
    %7 = vector.multi_reduction <add>, %5, %cst_7 [1] : vector<8x256xf32> to vector<8xf32>
    %8 = vector.shape_cast %7 : vector<8xf32> to vector<8x1xf32>
    %9 = vector.shape_cast %8 : vector<8x1xf32> to vector<1x8x1xf32>
    %c0_8 = arith.constant 0 : index
    %c0_9 = arith.constant 0 : index
    %c0_10 = arith.constant 0 : index
    %10 = vector.load %arg5[%c0_8, %c0_9, %c0_10] : memref<1x8x1xf32, #tpu.memory_space<vmem>>, vector<1x8x1xf32>
    tpu.vector_store %arg5[%c0_8, %c0_9, %c0_10], %9 {strides = array<i32>} : memref<1x8x1xf32, #tpu.memory_space<vmem>>, vector<1x8x1xf32>,
    %11 = arith.mulf %5, %5 : vector<8x256xf32>
    %cst_11 = arith.constant dense<0.000000e+00> : vector<8xf32>
    %12 = vector.multi_reduction <add>, %11, %cst_11 [1] : vector<8x256xf32> to vector<8xf32>
    %13 = vector.shape_cast %12 : vector<8xf32> to vector<8x1xf32>
    %14 = vector.shape_cast %13 : vector<8x1xf32> to vector<1x8x1xf32>
    %c0_12 = arith.constant 0 : index
    %c0_13 = arith.constant 0 : index
    %c0_14 = arith.constant 0 : index
    %15 = vector.load %arg6[%c0_12, %c0_13, %c0_14] : memref<1x8x1xf32, #tpu.memory_space<vmem>>, vector<1x8x1xf32>
    tpu.vector_store %arg6[%c0_12, %c0_13, %c0_14], %14 {strides = array<i32>} : memref<1x8x1xf32, #tpu.memory_space<vmem>>, vector<1x8x1xf32>,
    return
  }
  func.func @transform_0(%arg0: i32) -> (i32, i32) {
    %c0_i32 = arith.constant 0 : i32
    %c0_i32_0 = arith.constant 0 : i32
    return %c0_i32, %arg0 : i32, i32
  }
  func.func @transform_1(%arg0: i32) -> (i32, i32) {
    %c0_i32 = arith.constant 0 : i32
    %c0_i32_0 = arith.constant 0 : i32
    %c0_i32_1 = arith.constant 0 : i32
    return %c0_i32, %c0_i32_0 : i32, i32
  }
  func.func @transform_2(%arg0: i32) -> (i32, i32) {
    %c0_i32 = arith.constant 0 : i32
    %c0_i32_0 = arith.constant 0 : i32
    %c0_i32_1 = arith.constant 0 : i32
    return %c0_i32, %c0_i32_0 : i32, i32
  }
  func.func @transform_3(%arg0: i32) -> (i32, i32) {
    %c0_i32 = arith.constant 0 : i32
    %c0_i32_0 = arith.constant 0 : i32
    return %c0_i32, %arg0 : i32, i32
  }
  func.func @transform_4(%arg0: i32) -> (i32, i32, i32) {
    %c0_i32 = arith.constant 0 : i32
    %c0_i32_0 = arith.constant 0 : i32
    %c0_i32_1 = arith.constant 0 : i32
    return %arg0, %c0_i32, %c0_i32_0 : i32, i32, i32
  }
  func.func @transform_5(%arg0: i32) -> (i32, i32, i32) {
    %c0_i32 = arith.constant 0 : i32
    %c0_i32_0 = arith.constant 0 : i32
    %c0_i32_1 = arith.constant 0 : i32
    return %arg0, %c0_i32, %c0_i32_0 : i32, i32, i32
  }
}

</mosaic_0001>

<llo_original>
// kernel: tpu_custom_call.1
$region0: #{tpu_custom_call.1}
  #allocation0 [shape = 'u32[]', space=smem, size = 0x4, offset = 0x4, fixed_abs, tag = 'smem constant byte address 0x4 - core index']
  #allocation1 [shape = 'u32[144,128]{1,0:T(1,128)}', space=vmem, size = 0x12000, scoped, tag = 'internal scratch']
  %s0 = inlined_call_operand.hbm [shape: bf16[36,512], index: 0, kind: input, shape index: {}]
  %s1 = inlined_call_operand.vmem [shape: bf16[8,36], index: 1, kind: input, shape index: {}]
  %s2 = inlined_call_operand.vmem [shape: f32[8,1], index: 2, kind: input, shape index: {}]
  %s3 = inlined_call_operand.hbm [shape: f32[8,512], index: 3, kind: output, shape index: {0}]
  %s4 = inlined_call_operand.vmem [shape: f32[2,8,1], index: 4, kind: output, shape index: {1}]
  %s5 = inlined_call_operand.vmem [shape: f32[2,8,1], index: 5, kind: output, shape index: {2}]
  %6 = xla_tuple %s3, %s4, %s5
  %s7 = sld [smem:[#allocation0]]
  $region65: #{tpu_custom_call.1} parent=0
    _
  %s9 = ssub.s32 1, %s7
  %s10 = scalar_select 0, %s9, %s7
  $region1: #{tpu_custom_call.1} parent=0
    #allocation2 [shape = 'u8[40960]{0}', space=vmem, size = 0xa000, scoped, tag = 'input window, operand 0']
    #allocation3 [shape = 's32[2]{0}', space=sflag, size = 0x8, scoped, tag = 'scoped memory for tpu_custom_call.1']
    #allocation4 [shape = 's32[2]{0}', space=sflag, size = 0x8, scoped, tag = 'scoped memory for tpu_custom_call.1']
    #allocation5 [shape = 'u8[16384]{0}', space=vmem, size = 0x4000, scoped, tag = 'output window, operand 0']
    %11 = vsyncpa [#allocation3], 0
    %s12 = scalar_lea.sflag [#allocation3], 1
    %13 = vsyncpa %s12, 0
    %14 = vsyncpa [#allocation4], 0
    %s15 = scalar_lea.sflag [#allocation4], 1
    %16 = vsyncpa %s15, 0
    loop: start=0, step=1, limit=4
    $region2: #{tpu_custom_call.1} parent=1 // loop_pre_header
      _
    $region3: #{tpu_custom_call.1} parent=1 // loop_header
      %s18 = sphi 0, %s22
      %p19 = scmp.ge.s32.totalorder %s18, 4
      %s28 = sphi 0, %s30
      %s31 = sphi 0, %s28
      %s32 = sphi 0, %s31
      %s48 = sphi 0, %s32
      %s52 = sphi 0, %s52
      %s54 = sphi 0, %s52
      %s55 = sphi 0, %s54
      %s69 = sphi 0, %s55
      %s73 = sphi 0, %s73
      %s75 = sphi 0, %s73
      %s76 = sphi 0, %s75
      %s90 = sphi 0, %s76
      %s96 = sphi 0, %s98
      %s99 = sphi 0, %s96
      %s100 = sphi 0, %s99
      %s116 = sphi 0, %s100
      %s122 = sphi 0, %s124
      %s125 = sphi 0, %s122
      %s126 = sphi 0, %s125
      %s142 = sphi 0, %s126
      %s148 = sphi 0, %s150
      %s151 = sphi 0, %s148
      %s152 = sphi 0, %s151
      %s168 = sphi 0, %s152
    $region4: #{tpu_custom_call.1} parent=1 // loop_header_branch
      %21 = sbr.rel (%p19) target = $region8
    $region5: #{tpu_custom_call.1} parent=1 // loop_body
      %s23 = ssub.s32 %s18, 1
      %s24 = ssub.s32 %s18, 2
      %s25 = sadd.s32 %s18, 1
      %s26 = ssub.s32 %s18, %s25
      %p27 = scmp.eq.s32.totalorder %s26, 0
      %s29 = sadd.s32 %s28, 1
      %s30 = scalar_select %p27, %s28, %s29
      %p33 = pneg %p27
      %p34 = scmp.eq.s32.totalorder %s18, 1
      %p35 = por %p33, %p34
      %p36 = scmp.ne.s32.totalorder %s28, %s31
      %p37 = scmp.eq.s32.totalorder %s18, 0
      %p38 = por %p36, %p37
      %p39 = scmp.ne.s32.totalorder %s28, %s31
      %p40 = scmp.eq.s32.totalorder %s23, 1
      %p41 = por %p39, %p40
      %p42 = scmp.ne.s32.totalorder %s31, %s32
      %p43 = scmp.eq.s32.totalorder %s23, 0
      %p44 = por %p42, %p43
      %p45 = scmp.ne.s32.totalorder %s31, %s32
      %p46 = scmp.eq.s32.totalorder %s24, 1
      %p47 = por %p45, %p46
      %p49 = scmp.ne.s32.totalorder %s32, %s48
      %p50 = scmp.eq.s32.totalorder %s24, 0
      %p51 = por %p49, %p50
      %s53 = sadd.s32 %s52, 1
      %p56 = scmp.eq.s32.totalorder %s18, 1
      %p57 = scmp.ne.s32.totalorder %s52, %s54
      %p58 = scmp.eq.s32.totalorder %s18, 0
      %p59 = por %p57, %p58
      %p60 = scmp.ne.s32.totalorder %s52, %s54
      %p61 = scmp.eq.s32.totalorder %s23, 1
      %p62 = por %p60, %p61
      %p63 = scmp.ne.s32.totalorder %s54, %s55
      %p64 = scmp.eq.s32.totalorder %s23, 0
      %p65 = por %p63, %p64
      %p66 = scmp.ne.s32.totalorder %s54, %s55
      %p67 = scmp.eq.s32.totalorder %s24, 1
      %p68 = por %p66, %p67
      %p70 = scmp.ne.s32.totalorder %s55, %s69
      %p71 = scmp.eq.s32.totalorder %s24, 0
      %p72 = por %p70, %p71
      %s74 = sadd.s32 %s73, 1
      %p77 = scmp.eq.s32.totalorder %s18, 1
      %p78 = scmp.ne.s32.totalorder %s73, %s75
      %p79 = scmp.eq.s32.totalorder %s18, 0
      %p80 = por %p78, %p79
      %p81 = scmp.ne.s32.totalorder %s73, %s75
      %p82 = scmp.eq.s32.totalorder %s23, 1
      %p83 = por %p81, %p82
      %p84 = scmp.ne.s32.totalorder %s75, %s76
      %p85 = scmp.eq.s32.totalorder %s23, 0
      %p86 = por %p84, %p85
      %p87 = scmp.ne.s32.totalorder %s75, %s76
      %p88 = scmp.eq.s32.totalorder %s24, 1
      %p89 = por %p87, %p88
      %p91 = scmp.ne.s32.totalorder %s76, %s90
      %p92 = scmp.eq.s32.totalorder %s24, 0
      %p93 = por %p91, %p92
      %s94 = ssub.s32 %s18, %s25
      %p95 = scmp.eq.s32.totalorder %s94, 0
      %s97 = sadd.s32 %s96, 1
      %s98 = scalar_select %p95, %s96, %s97
      %p101 = pneg %p95
      %p102 = scmp.eq.s32.totalorder %s18, 1
      %p103 = por %p101, %p102
      %p104 = scmp.ne.s32.totalorder %s96, %s99
      %p105 = scmp.eq.s32.totalorder %s18, 0
      %p106 = por %p104, %p105
      %p107 = scmp.ne.s32.totalorder %s96, %s99
      %p108 = scmp.eq.s32.totalorder %s23, 1
      %p109 = por %p107, %p108
      %p110 = scmp.ne.s32.totalorder %s99, %s100
      %p111 = scmp.eq.s32.totalorder %s23, 0
      %p112 = por %p110, %p111
      %p113 = scmp.ne.s32.totalorder %s99, %s100
      %p114 = scmp.eq.s32.totalorder %s24, 1
      %p115 = por %p113, %p114
      %p117 = scmp.ne.s32.totalorder %s100, %s116
      %p118 = scmp.eq.s32.totalorder %s24, 0
      %p119 = por %p117, %p118
      %s120 = ssub.s32 %s18, %s25
      %p121 = scmp.eq.s32.totalorder %s120, 0
      %s123 = sadd.s32 %s122, 1
      %s124 = scalar_select %p121, %s122, %s123
      %p127 = pneg %p121
      %p128 = scmp.eq.s32.totalorder %s18, 1
      %p129 = por %p127, %p128
      %p130 = scmp.ne.s32.totalorder %s122, %s125
      %p131 = scmp.eq.s32.totalorder %s18, 0
      %p132 = por %p130, %p131
      %p133 = scmp.ne.s32.totalorder %s122, %s125
      %p134 = scmp.eq.s32.totalorder %s23, 1
      %p135 = por %p133, %p134
      %p136 = scmp.ne.s32.totalorder %s125, %s126
      %p137 = scmp.eq.s32.totalorder %s23, 0
      %p138 = por %p136, %p137
      %p139 = scmp.ne.s32.totalorder %s125, %s126
      %p140 = scmp.eq.s32.totalorder %s24, 1
      %p141 = por %p139, %p140
      %p143 = scmp.ne.s32.totalorder %s126, %s142
      %p144 = scmp.eq.s32.totalorder %s24, 0
      %p145 = por %p143, %p144
      %s146 = ssub.s32 %s18, %s25
      %p147 = scmp.eq.s32.totalorder %s146, 0
      %s149 = sadd.s32 %s148, 1
      %s150 = scalar_select %p147, %s148, %s149
      %p153 = pneg %p147
      %p154 = scmp.eq.s32.totalorder %s18, 1
      %p155 = por %p153, %p154
      %p156 = scmp.ne.s32.totalorder %s148, %s151
      %p157 = scmp.eq.s32.totalorder %s18, 0
      %p158 = por %p156, %p157
      %p159 = scmp.ne.s32.totalorder %s148, %s151
      %p160 = scmp.eq.s32.totalorder %s23, 1
      %p161 = por %p159, %p160
      %p162 = scmp.ne.s32.totalorder %s151, %s152
      %p163 = scmp.eq.s32.totalorder %s23, 0
      %p164 = por %p162, %p163
      %p165 = scmp.ne.s32.totalorder %s151, %s152
      %p166 = scmp.eq.s32.totalorder %s24, 1
      %p167 = por %p165, %p166
      %p169 = scmp.ne.s32.totalorder %s152, %s168
      %p170 = scmp.eq.s32.totalorder %s24, 0
      %p171 = por %p169, %p170
      %p172 = scmp.le.s32.totalorder 1, %s18
      %p173 = scmp.lt.s32.totalorder %s18, 3
      %p174 = pnand %p172, %p173
      %p175 = pneg %p174
      // Predicated region
      $region9: #{tpu_custom_call.1} parent=5 // pred_check
        _
      $region10: #{tpu_custom_call.1} parent=5 // pred_check_branch
        %177 = sbr.rel (%p174) target = $region12
      $region11: #{tpu_custom_call.1} parent=5 // pred_region
        %s178 = ssub.s32 %s18, 1
        // Predicated region
        $region13: #{tpu_custom_call.1} parent=11 // pred_check
          %p179 = pneg %p65
        $region14: #{tpu_custom_call.1} parent=11 // pred_check_branch
          %181 = sbr.rel (%p179) target = $region16
        $region15: #{tpu_custom_call.1} parent=11 // pred_region
          _
        $region16: #{tpu_custom_call.1} parent=11 // pred_fallthru
          _
        // Predicated region
        $region17: #{tpu_custom_call.1} parent=11 // pred_check
          %p182 = pneg %p86
        $region18: #{tpu_custom_call.1} parent=11 // pred_check_branch
          %184 = sbr.rel (%p182) target = $region20
        $region19: #{tpu_custom_call.1} parent=11 // pred_region
          _
        $region20: #{tpu_custom_call.1} parent=11 // pred_fallthru
          _
      $region12: #{tpu_custom_call.1} parent=5 // pred_fallthru
        _
      %p185 = scmp.lt.s32.totalorder %s18, 2
      // Predicated region
      $region21: #{tpu_custom_call.1} parent=5 // pred_check
        %p186 = pneg %p185
      $region22: #{tpu_custom_call.1} parent=5 // pred_check_branch
        %188 = sbr.rel (%p186) target = $region24
      $region23: #{tpu_custom_call.1} parent=5 // pred_region
        // Predicated region
        $region25: #{tpu_custom_call.1} parent=23 // pred_check
          %p189 = pneg %p38
        $region26: #{tpu_custom_call.1} parent=23 // pred_check_branch
          %191 = sbr.rel (%p189) target = $region28
        $region27: #{tpu_custom_call.1} parent=23 // pred_region
          %s192 = sand.u32 %s28, 1
          %s193 = scalar_lea.sflag [#allocation3], %s192
          %s194 = sand.u32 %s28, 1
          %s195 = smul.addr %s194, 40
          %s196 = scalar_lea.vmem [#allocation2], %s195
          %s197 = smul.u32 2, %s18
          %s199 = ssub.s32 640, 640
          %200 = vsyncadd %s193, %s199
          %s201 = smul.addr %s197, 64
          %s202 = scalar_lea.hbm %s0, %s201
          %s203 = sshll.u32 %s196, 4
          %s204 = int_to_ptr.vmem [resolvable:$true] %s203
          %209 = dma.hbm_to_vmem [thread:$0]  %s202, 640, %s204, %s193, 256, 128, 8
        $region28: #{tpu_custom_call.1} parent=23 // pred_fallthru
          _
      $region24: #{tpu_custom_call.1} parent=5 // pred_fallthru
        _
      %p210 = scmp.le.s32.totalorder 1, %s18
      %p211 = scmp.lt.s32.totalorder %s18, 3
      %p212 = pnand %p210, %p211
      %p213 = pneg %p212
      // Predicated region
      $region29: #{tpu_custom_call.1} parent=5 // pred_check
        _
      $region30: #{tpu_custom_call.1} parent=5 // pred_check_branch
        %215 = sbr.rel (%p212) target = $region32
      $region31: #{tpu_custom_call.1} parent=5 // pred_region
        %s216 = ssub.s32 %s18, 1
        %s217 = sand.u32 %s31, 1
        %s218 = scalar_lea.sflag [#allocation3], %s217
        %s219 = sand.u32 %s31, 1
        %s220 = smul.addr %s219, 40
        %s221 = scalar_lea.vmem [#allocation2], %s220
        // Predicated region
        $region33: #{tpu_custom_call.1} parent=31 // pred_check
          %p222 = pneg %p44
        $region34: #{tpu_custom_call.1} parent=31 // pred_check_branch
          %224 = sbr.rel (%p222) target = $region36
        $region35: #{tpu_custom_call.1} parent=31 // pred_region
          %225 = dma.done %s218, 640
        $region36: #{tpu_custom_call.1} parent=31 // pred_fallthru
          _
        %s226 = sand.u32 %s31, 1
        %s227 = scalar_lea.sflag [#allocation3], %s226
        %s228 = sand.u32 %s31, 1
        %s229 = smul.addr %s228, 40
        %s230 = scalar_lea.vmem [#allocation2], %s229
        %p231 = pneg %p44
        %p232 = pneg %p41
        %p233 = pneg %p65
        %p234 = pneg %p62
        %p235 = pneg %p86
        %p236 = pneg %p83
        %p237 = pneg %p112
        %p238 = pneg %p109
        %s239 = sand.u32 %s99, 1
        %s240 = scalar_lea.sflag [#allocation4], %s239
        %s241 = sand.u32 %s99, 1
        %s242 = smul.addr %s241, 16
        %s243 = scalar_lea.vmem [#allocation5], %s242
        %p244 = pneg %p138
        %p245 = pneg %p135
        %p246 = scmp.lt.s32.totalorder %s23, 1
        %s247 = scalar_select %p246, %s23, 1
        %s248 = smul.addr %s247, 8
        %s249 = scalar_lea.vmem %s4, %s248
        %p250 = pneg %p164
        %p251 = pneg %p161
        %p252 = scmp.lt.s32.totalorder %s23, 1
        %s253 = scalar_select %p252, %s23, 1
        %s254 = smul.addr %s253, 8
        %s255 = scalar_lea.vmem %s5, %s254
        %s256 = smul.u32 2, %s23
        %s257 = smul.u32 2, %s23
        %p258 = scmp.lt.s32.totalorder %s23, 1
        %s259 = scalar_select %p258, %s23, 1
        %s260 = smul.addr %s259, 8
        %s261 = scalar_lea.vmem %s4, %s260
        %p262 = scmp.lt.s32.totalorder %s23, 1
        %s263 = scalar_select %p262, %s23, 1
        %s264 = smul.addr %s263, 8
        %s265 = scalar_lea.vmem %s5, %s264
        %v267 = vld [vmem:[%s1] sm:$0xf]
        %v268 = vld [vmem:[%s221] sm:$0xff]
        %v269 = vld [vmem:[%s221 + $0x8] sm:$0xff]
        %v270 = vld [vmem:[%s221 + $0x10] sm:$0xff]
        %v271 = vld [vmem:[%s221 + $0x18] sm:$0xff]
        %v272 = vld [vmem:[%s221 + $0x20] sm:$0x33]
        %v273 = vld [vmem:[%s2] sm:$0xff]
        %275 = vset.pattern.permute.xlu0 0
        %276 = vperm.xlu0 %275, %v273
        %v277 = vpop.permute.xlu0 %276
        %v284 = vunpack.c.l.b16 %v268
        %v285 = vunpack.c.h.b16 %v268
        %v286 = vunpack.c.l.b16 %v269
        %v287 = vunpack.c.h.b16 %v269
        %v288 = vunpack.c.l.b16 %v270
        %v289 = vunpack.c.h.b16 %v270
        %v290 = vunpack.c.l.b16 %v271
        %v291 = vunpack.c.h.b16 %v271
        %v292 = vunpack.c.l.b16 %v272
        %v293 = vunpack.c.h.b16 %v272
        %v294 = vpack.c.b16 %v286, %v284
        %v295 = vpack.c.b16 %v287, %v285
        %v296 = vpack.c.b16 %v290, %v288
        %v297 = vpack.c.b16 %v291, %v289
        %v298 = vpack.c.b16 %v292, %v292
        %v299 = vpack.c.b16 %v293, %v293
        %vm304 = vcmask 293888
        %v306 = vsel %vm304, %v267, 0
        %vm308 = vcmask 1041408
        %v310 = vsel %vm308, %v298, 0
        %v313 = vsel %vm308, %v299, 0
        %315 = vmatprep.subr.bf16.mxu0 %v295
        %316 = vmatpush1.bf16.msra.mxu0 %v294
        %317 = vmatprep.subr.bf16.mxu0 %v297
        %318 = vmatpush1.bf16.msra.mxu0 %v296
        %319 = vmatprep.subr.bf16.mxu0 %v313
        %320 = vmatpush1.bf16.msra.mxu0 %v310
        %321 = vmatprep.subr.bf16.mxu0 0
        %322 = vmatpush1.bf16.msra.mxu0 0
        %323 = vmatprep.subr.bf16.mxu0 0
        %324 = vmatpush1.bf16.msra.mxu0 0
        %325 = vmatprep.subr.bf16.mxu0 0
        %326 = vmatpush1.bf16.msra.mxu0 0
        %327 = vmatprep.subr.bf16.mxu0 0
        %328 = vmatpush1.bf16.msra.mxu0 0
        %329 = vmatprep.subr.bf16.mxu0 0
        %330 = vmatpush1.bf16.msra.mxu0 0
        %331 = vmatprep.subr.bf16.mxu0 0
        %332 = vmatpush1.bf16.msra.mxu0 0
        %333 = vmatprep.subr.bf16.mxu0 0
        %334 = vmatpush1.bf16.msra.mxu0 0
        %335 = vmatprep.subr.bf16.mxu0 0
        %336 = vmatpush1.bf16.msra.mxu0 0
        %337 = vmatprep.subr.bf16.mxu0 0
        %338 = vmatpush1.bf16.msra.mxu0 0
        %339 = vmatprep.subr.bf16.mxu0 0
        %340 = vmatpush1.bf16.msra.mxu0 0
        %341 = vmatprep.subr.bf16.mxu0 0
        %342 = vmatpush1.bf16.msra.mxu0 0
        %343 = vmatprep.subr.bf16.mxu0 0
        %344 = vmatpush1.bf16.msra.mxu0 0
        %345 = vmatprep.subr.bf16.mxu0 0
        %346 = vmatpush1.bf16.msra.mxu0 0
        %347 = vmatprep.mubr.bf16.mxu0 0
        %348 = vmatmul.mubr.bf16.gmra.mrb[0].mxu0 %v306
        %v349 = vpop.f32.mrb[0].mxu0
        %v350 = vadd.f32 %v277, %v349
        %v351 = vpop.f32.mrb[0].mxu0
        %v352 = vadd.f32 %v277, %v351
        %v353 = vpop.f32.mrb[0].mxu0
        %v354 = vpop.f32.mrb[0].mxu0
        %355 = vdwg.mxu0
        %356 = vst [vmem:[%s243] sm:$0xff] %v350
        %357 = vst [vmem:[%s243 + $0x8] sm:$0xff] %v352
        %v358 = vadd.f32 %v350, %v352
        %359 = vadd.xlane.f32.xlu0 %v358
        %v360 = vpop.xlane.xlu0 %359
        %vm361 = vcmask 7168
        %362 = vst.msk [vmem:[%s261] sm:$0xff] %vm361, %v360
        %v363 = vmul.f32 %v350, %v350
        %v364 = vmul.f32 %v352, %v352
        %v365 = vadd.f32 %v363, %v364
        %366 = vadd.xlane.f32.xlu0 %v365
        %v367 = vpop.xlane.xlu0 %366
        %368 = vst.msk [vmem:[%s265] sm:$0xff] %vm361, %v367
        %s369 = sand.u32 %s99, 1
        %s370 = scalar_lea.sflag [#allocation4], %s369
        %s371 = sand.u32 %s99, 1
        %s372 = smul.addr %s371, 16
        %s373 = scalar_lea.vmem [#allocation5], %s372
        %p374 = scmp.lt.s32.totalorder %s23, 1
        %s375 = scalar_select %p374, %s23, 1
        %s376 = smul.addr %s375, 8
        %s377 = scalar_lea.vmem %s4, %s376
        %p378 = scmp.lt.s32.totalorder %s23, 1
        %s379 = scalar_select %p378, %s23, 1
        %s380 = smul.addr %s379, 8
        %s381 = scalar_lea.vmem %s5, %s380
        // Predicated region
        $region37: #{tpu_custom_call.1} parent=31 // pred_check
          %p382 = pneg %p109
        $region38: #{tpu_custom_call.1} parent=31 // pred_check_branch
          %384 = sbr.rel (%p382) target = $region40
        $region39: #{tpu_custom_call.1} parent=31 // pred_region
          %s385 = smul.u32 2, %s23
          %s387 = ssub.s32 256, 256
          %388 = vsyncadd %s370, %s387
          %s389 = smul.addr %s385, 128
          %s390 = scalar_lea.hbm %s3, %s389
          %s392 = sshll.u32 %s373, 4
          %s393 = int_to_ptr.vmem [resolvable:$true] %s392
          %395 = dma.vmem_to_hbm [thread:$0]  %s393, 256, %s390, %s370
        $region40: #{tpu_custom_call.1} parent=31 // pred_fallthru
          _
        // Predicated region
        $region41: #{tpu_custom_call.1} parent=31 // pred_check
          %p396 = pneg %p135
        $region42: #{tpu_custom_call.1} parent=31 // pred_check_branch
          %398 = sbr.rel (%p396) target = $region44
        $region43: #{tpu_custom_call.1} parent=31 // pred_region
          _
        $region44: #{tpu_custom_call.1} parent=31 // pred_fallthru
          _
        // Predicated region
        $region45: #{tpu_custom_call.1} parent=31 // pred_check
          %p399 = pneg %p161
        $region46: #{tpu_custom_call.1} parent=31 // pred_check_branch
          %401 = sbr.rel (%p399) target = $region48
        $region47: #{tpu_custom_call.1} parent=31 // pred_region
          _
        $region48: #{tpu_custom_call.1} parent=31 // pred_fallthru
          _
      $region32: #{tpu_custom_call.1} parent=5 // pred_fallthru
        _
      %p402 = scmp.le.s32.totalorder 2, %s18
      // Predicated region
      $region49: #{tpu_custom_call.1} parent=5 // pred_check
        %p403 = pneg %p402
      $region50: #{tpu_custom_call.1} parent=5 // pred_check_branch
        %405 = sbr.rel (%p403) target = $region52
      $region51: #{tpu_custom_call.1} parent=5 // pred_region
        %s406 = ssub.s32 %s18, 2
        // Predicated region
        $region53: #{tpu_custom_call.1} parent=51 // pred_check
          %p407 = pneg %p115
        $region54: #{tpu_custom_call.1} parent=51 // pred_check_branch
          %409 = sbr.rel (%p407) target = $region56
        $region55: #{tpu_custom_call.1} parent=51 // pred_region
          %s410 = sand.u32 %s100, 1
          %s411 = scalar_lea.sflag [#allocation4], %s410
          %s412 = sand.u32 %s100, 1
          %s413 = smul.addr %s412, 16
          %s414 = scalar_lea.vmem [#allocation5], %s413
          %415 = dma.done %s411, 256
        $region56: #{tpu_custom_call.1} parent=51 // pred_fallthru
          _
        // Predicated region
        $region57: #{tpu_custom_call.1} parent=51 // pred_check
          %p416 = pneg %p141
        $region58: #{tpu_custom_call.1} parent=51 // pred_check_branch
          %418 = sbr.rel (%p416) target = $region60
        $region59: #{tpu_custom_call.1} parent=51 // pred_region
          %p419 = scmp.lt.s32.totalorder %s24, 1
          %s420 = scalar_select %p419, %s24, 1
          %s421 = smul.addr %s420, 8
          %s422 = scalar_lea.vmem %s4, %s421
        $region60: #{tpu_custom_call.1} parent=51 // pred_fallthru
          _
        // Predicated region
        $region61: #{tpu_custom_call.1} parent=51 // pred_check
          %p423 = pneg %p167
        $region62: #{tpu_custom_call.1} parent=51 // pred_check_branch
          %425 = sbr.rel (%p423) target = $region64
        $region63: #{tpu_custom_call.1} parent=51 // pred_region
          %p426 = scmp.lt.s32.totalorder %s24, 1
          %s427 = scalar_select %p426, %s24, 1
          %s428 = smul.addr %s427, 8
          %s429 = scalar_lea.vmem %s5, %s428
        $region64: #{tpu_custom_call.1} parent=51 // pred_fallthru
          _
      $region52: #{tpu_custom_call.1} parent=5 // pred_fallthru
        _
    $region6: #{tpu_custom_call.1} parent=1 // loop_footer
      %s22 = sadd.s32 1, %s18
    $region7: #{tpu_custom_call.1} parent=1 // loop_footer_branch
      %17 = sbr.rel target = $region3
    $region8: #{tpu_custom_call.1} parent=1 // loop_exit
      _
    %430 = vsyncpa [#allocation3], 1
    %s431 = scalar_lea.sflag [#allocation3], 1
    %432 = vsyncpa %s431, 1
    %433 = vsyncpa [#allocation4], 1
    %s434 = scalar_lea.sflag [#allocation4], 1
    %435 = vsyncpa %s434, 1

</llo_original>
